<compile_context>
chip_gen: v6e
topology: v6e:2x2x1
jax: 0.10.0
libtpu: 0.0.40
codegen_flags: <defaults>
</compile_context>

<pallas_src>
import functools

import jax
import jax.numpy as jnp
from jax.experimental import pallas as pl
from jax.experimental.pallas import tpu as pltpu

LANES = 128
BLOCK_BYTES_TARGET = 1 << 20   # ~1 MiB of input DMA per block, per input
TILE_ROWS_CAP = 2048           # keeps buffers + f32 temps well inside scoped VMEM
ACC_ROWS_TARGET = 64           # small folded accumulator, >=8 independent add chains


def _num_tensorcores() -> int:
    """Best-effort TensorCores-per-chip (2 on v7x/v4/v5p megacore, else 1)."""
    try:
        info = pltpu.get_tpu_info()
        for name in ("num_cores", "num_tensorcores", "tensorcores_per_chip",
                     "cores_per_chip", "num_cores_per_chip"):
            v = getattr(info, name, None)
            if isinstance(v, int) and 1 <= v <= 8:
                return v
    except Exception:
        pass
    try:
        kind = jax.devices()[0].device_kind.lower()
        if any(tag in kind for tag in ("v7", "7x", "v4", "v5p")):
            return 2
    except Exception:
        pass
    return 1


def _algebraic_loss_kernel(y_ref, yp_ref, out_ref, acc_ref, *,
                           tile_rows, acc_rows, blocks_per_core, rows_valid,
                           needs_mask):
    c = pl.program_id(0)   # TensorCore-split axis ("parallel")
    i = pl.program_id(1)   # reduction axis ("arbitrary")

    # Zero the per-core accumulator at the start of each core's loop.
    @pl.when(i == 0)
    def _():
        acc_ref[...] = jnp.zeros_like(acc_ref)

    e = y_ref[...].astype(jnp.float32) - yp_ref[...].astype(jnp.float32)
    e2 = e * e
    val = e2 * jax.lax.rsqrt(1.0 + e2)       # e^2 / sqrt(1 + e^2): one EUP op

    def fold_add(v):
        # (tile_rows,128) -> (acc_rows,128): leading-dim split is layout
        # preserving, so this is pure vreg-wise VPU adds (no XLU).
        acc_ref[...] += v.reshape(tile_rows // acc_rows, acc_rows, LANES).sum(axis=0)

    if needs_mask:
        # Scalar predicate: block extends past the last valid row (ragged tail)
        # or is a clamped duplicate.  Interior blocks skip the mask entirely.
        block_start = (c * blocks_per_core + i) * tile_rows
        is_full = block_start + tile_rows <= rows_valid

        @pl.when(is_full)
        def _():
            fold_add(val)

        @pl.when(jnp.logical_not(is_full))
        def _():
            row_ids = block_start + jax.lax.broadcasted_iota(
                jnp.int32, (tile_rows, LANES), 0)
            # Keep this a select (not a multiply) so garbage/NaN in the
            # out-of-range rows never propagates.
            fold_add(jnp.where(row_ids < rows_valid, val, 0.0))
    else:
        fold_add(val)

    # Once per core: fold the (acc_rows,128) accumulator down to (8,128).
    @pl.when(i == pl.num_programs(1) - 1)
    def _():
        out_ref[...] = jnp.sum(
            acc_ref[...].reshape(acc_rows // 8, 8, LANES), axis=0)


def algebraic_loss(y_t, y_prime_t, *, tile_rows=None, n_cores=None):
    assert y_t.shape == y_prime_t.shape
    n = y_t.size
    assert n > 0

    flat_y = jnp.ravel(y_t)        # native dtype in HBM (no wrapper astype copy)
    flat_yp = jnp.ravel(y_prime_t)

    # Pad only when the lane dim is ragged (n % 128 != 0) or the input is tiny
    # (< 8 rows).  The row-ragged tail of larger inputs is handled by the
    # in-kernel mask, so multiples of 128 stream with no pad copy at all.
    n_pad = max(pl.cdiv(n, LANES) * LANES, 8 * LANES)
    if n_pad != n:
        flat_y = jnp.pad(flat_y, (0, n_pad - n))     # zeros contribute exactly 0
        flat_yp = jnp.pad(flat_yp, (0, n_pad - n))

    rows = n_pad // LANES          # >= 8

    if tile_rows is None:
        itemsize = jnp.dtype(y_t.dtype).itemsize
        target = BLOCK_BYTES_TARGET // (LANES * itemsize)
        target = max(64, min(TILE_ROWS_CAP, target))
        target -= target % 64
        tile_rows = min(target, (rows // 8) * 8)     # multiple of 8, <= rows
    assert tile_rows % 8 == 0 and 0 < tile_rows <= rows

    acc_rows = ACC_ROWS_TARGET if tile_rows % ACC_ROWS_TARGET == 0 else 8

    total_blocks = pl.cdiv(rows, tile_rows)
    if n_cores is None:
        n_cores = _num_tensorcores()
    if total_blocks < 2:
        n_cores = 1                                   # nothing to split
    bpc = pl.cdiv(total_blocks, n_cores)              # blocks per core
    needs_clamp = (n_cores * bpc != total_blocks)
    needs_mask = (n_cores * bpc * tile_rows != rows)

    y2d = flat_y.reshape(rows, LANES)
    yp2d = flat_yp.reshape(rows, LANES)

    if needs_clamp:
        # The short core's trailing iteration re-maps to its own previous block
        # (consecutive identical block index -> pipeline skips the re-DMA) and
        # is fully masked inside the kernel.
        def in_map(c, i):
            return (jnp.minimum(c * bpc + i, total_blocks - 1), 0)
    else:
        def in_map(c, i):
            return (c * bpc + i, 0)

    kernel = functools.partial(
        _algebraic_loss_kernel,
        tile_rows=tile_rows,
        acc_rows=acc_rows,
        blocks_per_core=bpc,
        rows_valid=rows,
        needs_mask=needs_mask,
    )

    partials = pl.pallas_call(
        kernel,
        out_shape=jax.ShapeDtypeStruct((n_cores * 8, LANES), jnp.float32),
        grid_spec=pltpu.PrefetchScalarGridSpec(
            num_scalar_prefetch=0,
            grid=(n_cores, bpc),
            in_specs=[
                pl.BlockSpec((tile_rows, LANES), in_map),
                pl.BlockSpec((tile_rows, LANES), in_map),
            ],
            out_specs=pl.BlockSpec((8, LANES), lambda c, i: (c, 0)),
            scratch_shapes=[pltpu.VMEM((acc_rows, LANES), jnp.float32)],
        ),
        compiler_params=pltpu.CompilerParams(
            dimension_semantics=("parallel", "arbitrary"),
        ),
    )(y2d, yp2d)

    # Tiny final reduction + mean in plain JAX (divide by the ORIGINAL count).
    return jnp.sum(partials) / jnp.float32(n)


def _reference(y_t, y_prime_t):
    e = y_t.astype(jnp.float32) - y_prime_t.astype(jnp.float32)
    return jnp.mean(e * e / jnp.sqrt(1.0 + e * e))


if __name__ == "__main__":
    key = jax.random.PRNGKey(0)
    ks = jax.random.split(key, 8)

    # 1) Main check: NCHW-like f32, lane aligned -> no pad, no mask, one block.
    shape = (2, 4, 16, 16)
    y_t = jax.random.normal(ks[0], shape, dtype=jnp.float32)
    y_prime_t = jax.random.normal(ks[1], shape, dtype=jnp.float32)
    loss = algebraic_loss(y_t, y_prime_t)
    jax.block_until_ready(loss)
    ref = _reference(y_t, y_prime_t)
    assert jnp.allclose(loss, ref, rtol=1e-5, atol=1e-6), (loss, ref)

    # 2) Odd tiny bf16 shape: exercises the pad path.
    a = jax.random.normal(ks[2], (3, 5, 7), dtype=jnp.bfloat16)
    b = jax.random.normal(ks[3], (3, 5, 7), dtype=jnp.bfloat16)
    loss2 = algebraic_loss(a, b)
    jax.block_until_ready(loss2)
    ref2 = _reference(a, b)
    assert jnp.allclose(loss2, ref2, rtol=1e-4, atol=1e-5), (loss2, ref2)

    # 3) Multi-block f32 with a ragged last block: exercises the gated mask
    #    (interior block unmasked, tail block masked) and the 64-row accumulator.
    shape3 = (4, 8, 96, 96)   # 294912 elems = 2304 rows, tile 2048 -> 2 blocks
    c_ = jax.random.normal(ks[4], shape3, dtype=jnp.float32)
    d_ = jax.random.normal(ks[5], shape3, dtype=jnp.float32)
    loss3 = algebraic_loss(c_, d_)
    jax.block_until_ready(loss3)
    ref3 = _reference(c_, d_)
    assert jnp.allclose(loss3, ref3, rtol=1e-4, atol=1e-6), (loss3, ref3)

    # 4) Forced 2-core split, odd block count, rows not a multiple of 8:
    #    exercises the clamped (deduped, fully masked) duplicate block.
    e_ = jax.random.normal(ks[6], (2, 11, 128), dtype=jnp.float32)  # rows=22
    f_ = jax.random.normal(ks[7], (2, 11, 128), dtype=jnp.float32)
    loss4 = algebraic_loss(e_, f_, tile_rows=8, n_cores=2)
    jax.block_until_ready(loss4)
    ref4 = _reference(e_, f_)
    assert jnp.allclose(loss4, ref4, rtol=1e-4, atol=1e-6), (loss4, ref4)

    print("KERNEL_OK")
</pallas_src>

<mosaic_0001>
module attributes {stable_mosaic.version = 11 : i64} {
  func.func @_algebraic_loss_kernel(%arg0: i32, %arg1: i32, %arg2: memref<16x128xf32, #tpu.memory_space<vmem>>, %arg3: memref<16x128xf32, #tpu.memory_space<vmem>>, %arg4: memref<8x128xf32, #tpu.memory_space<vmem>>, %arg5: memref<8x128xf32, #tpu.memory_space<vmem>>) attributes {dimension_semantics = [#tpu.dimension_semantics<parallel>, #tpu.dimension_semantics<arbitrary>], iteration_bounds = array<i64: 1, 1>, scalar_prefetch = 0 : i64, scratch_operands = 1 : i64, tpu.core_type = #tpu.core_type<tc>, window_params = [{transform_indices = @transform_0, window_bounds = array<i64: 16, 128>}, {transform_indices = @transform_1, window_bounds = array<i64: 16, 128>}, {transform_indices = @transform_2, window_bounds = array<i64: 8, 128>}]} {
    %c0_i32 = arith.constant 0 : i32
    %0 = arith.cmpi eq, %arg1, %c0_i32 : i32
    %1 = arith.extui %0 : i1 to i32
    %c0_i32_0 = arith.constant 0 : i32
    %2 = arith.cmpi ne, %1, %c0_i32_0 : i32
    scf.if %2 {
      %cst_11 = arith.constant 0.000000e+00 : f32
      %19 = vector.broadcast %cst_11 : f32 to vector<8x128xf32>
      %c0_12 = arith.constant 0 : index
      %c0_13 = arith.constant 0 : index
      %20 = vector.load %arg5[%c0_12, %c0_13] : memref<8x128xf32, #tpu.memory_space<vmem>>, vector<8x128xf32>
      tpu.vector_store %arg5[%c0_12, %c0_13], %19 {strides = array<i32>} : memref<8x128xf32, #tpu.memory_space<vmem>>, vector<8x128xf32>,
    } else {
    }
    %c0 = arith.constant 0 : index
    %c0_1 = arith.constant 0 : index
    %3 = vector.load %arg2[%c0, %c0_1] : memref<16x128xf32, #tpu.memory_space<vmem>>, vector<16x128xf32>
    %c0_2 = arith.constant 0 : index
    %c0_3 = arith.constant 0 : index
    %4 = vector.load %arg3[%c0_2, %c0_3] : memref<16x128xf32, #tpu.memory_space<vmem>>, vector<16x128xf32>
    %5 = arith.subf %3, %4 : vector<16x128xf32>
    %6 = arith.mulf %5, %5 : vector<16x128xf32>
    %cst = arith.constant 1.000000e+00 : f32
    %7 = vector.broadcast %cst : f32 to vector<16x128xf32>
    %8 = arith.addf %7, %6 : vector<16x128xf32>
    %9 = math.rsqrt %8 : vector<16x128xf32>
    %10 = arith.mulf %6, %9 : vector<16x128xf32>
    %c0_4 = arith.constant 0 : index
    %c0_5 = arith.constant 0 : index
    %11 = vector.load %arg5[%c0_4, %c0_5] : memref<8x128xf32, #tpu.memory_space<vmem>>, vector<8x128xf32>
    %12 = vector.shape_cast %10 : vector<16x128xf32> to vector<2x8x128xf32>
    %cst_6 = arith.constant dense<0.000000e+00> : vector<8x128xf32>
    %13 = vector.multi_reduction <add>, %12, %cst_6 [0] : vector<2x8x128xf32> to vector<8x128xf32>
    %14 = arith.addf %11, %13 : vector<8x128xf32>
    %c0_7 = arith.constant 0 : index
    %c0_8 = arith.constant 0 : index
    %15 = vector.load %arg5[%c0_7, %c0_8] : memref<8x128xf32, #tpu.memory_space<vmem>>, vector<8x128xf32>
    tpu.vector_store %arg5[%c0_7, %c0_8], %14 {strides = array<i32>} : memref<8x128xf32, #tpu.memory_space<vmem>>, vector<8x128xf32>,
    %c0_i32_9 = arith.constant 0 : i32
    %16 = arith.cmpi eq, %arg1, %c0_i32_9 : i32
    %17 = arith.extui %16 : i1 to i32
    %c0_i32_10 = arith.constant 0 : i32
    %18 = arith.cmpi ne, %17, %c0_i32_10 : i32
    scf.if %18 {
      %c0_11 = arith.constant 0 : index
      %c0_12 = arith.constant 0 : index
      %19 = vector.load %arg5[%c0_11, %c0_12] : memref<8x128xf32, #tpu.memory_space<vmem>>, vector<8x128xf32>
      %20 = vector.shape_cast %19 : vector<8x128xf32> to vector<1x8x128xf32>
      %cst_13 = arith.constant dense<0.000000e+00> : vector<8x128xf32>
      %21 = vector.multi_reduction <add>, %20, %cst_13 [0] : vector<1x8x128xf32> to vector<8x128xf32>
      %c0_14 = arith.constant 0 : index
      %c0_15 = arith.constant 0 : index
      %22 = vector.load %arg4[%c0_14, %c0_15] : memref<8x128xf32, #tpu.memory_space<vmem>>, vector<8x128xf32>
      tpu.vector_store %arg4[%c0_14, %c0_15], %21 {strides = array<i32>} : memref<8x128xf32, #tpu.memory_space<vmem>>, vector<8x128xf32>,
    } else {
    }
    return
  }
  func.func @transform_0(%arg0: i32, %arg1: i32) -> (i32, i32) {
    %c1_i32 = arith.constant 1 : i32
    %0 = arith.muli %arg0, %c1_i32 : i32
    %1 = arith.addi %0, %arg1 : i32
    %c0_i32 = arith.constant 0 : i32
    %c0_i32_0 = arith.constant 0 : i32
    return %1, %c0_i32 : i32, i32
  }
  func.func @transform_1(%arg0: i32, %arg1: i32) -> (i32, i32) {
    %c1_i32 = arith.constant 1 : i32
    %0 = arith.muli %arg0, %c1_i32 : i32
    %1 = arith.addi %0, %arg1 : i32
    %c0_i32 = arith.constant 0 : i32
    %c0_i32_0 = arith.constant 0 : i32
    return %1, %c0_i32 : i32, i32
  }
  func.func @transform_2(%arg0: i32, %arg1: i32) -> (i32, i32) {
    %c0_i32 = arith.constant 0 : i32
    %c0_i32_0 = arith.constant 0 : i32
    return %arg0, %c0_i32 : i32, i32
  }
}

</mosaic_0001>

<llo_original>
// kernel: tpu_custom_call.1
$region0: #{tpu_custom_call.1}
  #allocation0 [shape = 'u32[]', space=smem, size = 0x4, offset = 0x4, fixed_abs, tag = 'smem constant byte address 0x4 - core index']
  #allocation1 [shape = 'u32[144,128]{1,0:T(1,128)}', space=vmem, size = 0x12000, scoped, tag = 'internal scratch']
  #allocation2 [shape = 'f32[8,128]{1,0:T(8,128)}', space=vmem, size = 0x1000, scoped, tag = 'scratch operand']
  %s0 = inlined_call_operand.hbm [shape: f32[16,128], index: 0, kind: input, shape index: {}]
  %s1 = inlined_call_operand.hbm [shape: f32[16,128], index: 1, kind: input, shape index: {}]
  %s2 = inlined_call_operand.hbm [shape: f32[8,128], index: 2, kind: output, shape index: {}]
  %s3 = sld [smem:[#allocation0]]
  $region34: #{tpu_custom_call.1} parent=0
    _
  %s5 = ssub.s32 1, %s3
  %s6 = scalar_select 0, %s5, %s3
  $region1: #{tpu_custom_call.1} parent=0
    #allocation3 [shape = 'u8[8192]{0}', space=vmem, size = 0x2000, scoped, tag = 'input window, operand 0, single buffered']
    #allocation4 [shape = 's32[1]{0}', space=sflag, size = 0x4, scoped, tag = 'scoped memory for tpu_custom_call.1']
    #allocation5 [shape = 's32[1]{0}', space=sflag, size = 0x4, scoped, tag = 'scoped memory for tpu_custom_call.1']
    #allocation6 [shape = 'u8[8192]{0}', space=vmem, size = 0x2000, scoped, tag = 'input window, operand 1, single buffered']
    #allocation7 [shape = 's32[1]{0}', space=sflag, size = 0x4, scoped, tag = 'scoped memory for tpu_custom_call.1']
    #allocation8 [shape = 'u8[4096]{0}', space=vmem, size = 0x1000, scoped, tag = 'output window, operand 0, single buffered']
    %7 = vsyncpa [#allocation4], 0
    %8 = vsyncpa [#allocation7], 0
    %9 = vsyncpa [#allocation5], 0
    // Predicated region
    $region2: #{tpu_custom_call.1} parent=1 // pred_check
      _
    $region3: #{tpu_custom_call.1} parent=1 // pred_check_branch
      %11 = sbr.rel (0) target = $region5
    $region4: #{tpu_custom_call.1} parent=1 // pred_region
      %s12 = sadd.s32 0, 0
      %s13 = smul.u32 2, %s12
      %s15 = ssub.s32 256, 256
      %16 = vsyncadd [#allocation4], %s15
      %s17 = smul.addr %s13, 128
      %s18 = scalar_lea.hbm %s0, %s17
      %s19 = sshll.u32 [#allocation3], 4
      %s20 = int_to_ptr.vmem [resolvable:$true] %s19
      %25 = dma.hbm_to_vmem [thread:$0]  %s18, 256, %s20, [#allocation4], 128, 128, 8
    $region5: #{tpu_custom_call.1} parent=1 // pred_fallthru
      _
    // Predicated region
    $region6: #{tpu_custom_call.1} parent=1 // pred_check
      _
    $region7: #{tpu_custom_call.1} parent=1 // pred_check_branch
      %27 = sbr.rel (0) target = $region9
    $region8: #{tpu_custom_call.1} parent=1 // pred_region
      %s28 = sadd.s32 0, 0
      %s29 = smul.u32 2, %s28
      %s31 = ssub.s32 256, 256
      %32 = vsyncadd [#allocation7], %s31
      %s33 = smul.addr %s29, 128
      %s34 = scalar_lea.hbm %s1, %s33
      %s35 = sshll.u32 [#allocation6], 4
      %s36 = int_to_ptr.vmem [resolvable:$true] %s35
      %41 = dma.hbm_to_vmem [thread:$0]  %s34, 256, %s36, [#allocation7], 128, 128, 8
    $region9: #{tpu_custom_call.1} parent=1 // pred_fallthru
      _
    // Predicated region
    $region10: #{tpu_custom_call.1} parent=1 // pred_check
      _
    $region11: #{tpu_custom_call.1} parent=1 // pred_check_branch
      %43 = sbr.rel (0) target = $region13
    $region12: #{tpu_custom_call.1} parent=1 // pred_region
      %44 = dma.done [#allocation4], 256
    $region13: #{tpu_custom_call.1} parent=1 // pred_fallthru
      _
    // Predicated region
    $region14: #{tpu_custom_call.1} parent=1 // pred_check
      _
    $region15: #{tpu_custom_call.1} parent=1 // pred_check_branch
      %46 = sbr.rel (0) target = $region17
    $region16: #{tpu_custom_call.1} parent=1 // pred_region
      %47 = dma.done [#allocation7], 256
    $region17: #{tpu_custom_call.1} parent=1 // pred_fallthru
      _
    %s48 = sadd.s32 0, 0
    %s49 = smul.u32 2, %s48
    %s50 = sadd.s32 0, 0
    %s51 = smul.u32 2, %s50
    %p52 = scmp.eq.s32.totalorder 0, 0
    // Predicated region
    $region18: #{tpu_custom_call.1} parent=1 // pred_check
      %p53 = pneg %p52
    $region19: #{tpu_custom_call.1} parent=1 // pred_check_branch
      %55 = sbr.rel (%p53) target = $region21
    $region20: #{tpu_custom_call.1} parent=1 // pred_region
      %56 = vst [vmem:[#allocation2] sm:$0xff] 0.0
    $region21: #{tpu_custom_call.1} parent=1 // pred_fallthru
      _
    %v57 = vld [vmem:[#allocation3] sm:$0xff]
    %v58 = vld [vmem:[#allocation3 + $0x8] sm:$0xff]
    %v59 = vld [vmem:[#allocation6] sm:$0xff]
    %v60 = vld [vmem:[#allocation6 + $0x8] sm:$0xff]
    %v61 = vsub.f32 %v57, %v59
    %v62 = vsub.f32 %v58, %v60
    %v63 = vmul.f32 %v61, %v61
    %v64 = vmul.f32 %v62, %v62
    %v65 = vadd.f32 %v63, 1.0
    %v66 = vadd.f32 %v64, 1.0
    %v67 = vrsqrt.pop %v65
    %v68 = vrsqrt.pop %v66
    %v69 = vmul.f32 %v63, %v67
    %v70 = vmul.f32 %v64, %v68
    %v71 = vld [vmem:[#allocation2] sm:$0xff]
    %v72 = vadd.f32 %v69, %v70
    %v73 = vadd.f32 %v71, %v72
    %74 = vst [vmem:[#allocation2] sm:$0xff] %v73
    // Predicated region
    $region22: #{tpu_custom_call.1} parent=1 // pred_check
      %p75 = pneg %p52
    $region23: #{tpu_custom_call.1} parent=1 // pred_check_branch
      %77 = sbr.rel (%p75) target = $region25
    $region24: #{tpu_custom_call.1} parent=1 // pred_region
      %v78 = vld [vmem:[#allocation2] sm:$0xff]
      %v79 = vadd.f32 %v78, 0.0
      %80 = vst [vmem:[#allocation8] sm:$0xff] %v79
    $region25: #{tpu_custom_call.1} parent=1 // pred_fallthru
      _
    // Predicated region
    $region26: #{tpu_custom_call.1} parent=1 // pred_check
      _
    $region27: #{tpu_custom_call.1} parent=1 // pred_check_branch
      %82 = sbr.rel (0) target = $region29
    $region28: #{tpu_custom_call.1} parent=1 // pred_region
      %s84 = ssub.s32 128, 128
      %85 = vsyncadd [#allocation5], %s84
      %s87 = sshll.u32 [#allocation8], 4
      %s88 = int_to_ptr.vmem [resolvable:$true] %s87
      %90 = dma.vmem_to_hbm [thread:$0]  %s88, 128, %s2, [#allocation5]
    $region29: #{tpu_custom_call.1} parent=1 // pred_fallthru
      _
    // Predicated region
    $region30: #{tpu_custom_call.1} parent=1 // pred_check
      _
    $region31: #{tpu_custom_call.1} parent=1 // pred_check_branch
      %92 = sbr.rel (0) target = $region33
    $region32: #{tpu_custom_call.1} parent=1 // pred_region
      %93 = dma.done [#allocation5], 128
    $region33: #{tpu_custom_call.1} parent=1 // pred_fallthru
      _
    %94 = vsyncpa [#allocation4], 1
    %95 = vsyncpa [#allocation7], 1
    %96 = vsyncpa [#allocation5], 1

</llo_original>
